<compile_context>
chip_gen: v5e
topology: v5e:2x2
jax: 0.10.0
libtpu: 0.0.40
codegen_flags: <defaults>
</compile_context>

<pallas_src>
import functools

import jax
import jax.numpy as jnp
from jax.experimental import pallas as pl
from jax.experimental.pallas import tpu as pltpu

_TARGET_TILE_BYTES = 4 << 20   # ~4 MiB padded VMEM per input tile (2 in x 2 bufs = 16 MiB)
_MIN_TOTAL_BLOCKS = 4          # keep >=4 grid steps so the v7x megacore stays balanced
_SMALL_FUSED_LIMIT = 2 << 20   # raw bytes; below this, duration+pitch ride in the mel call
_VMEM_SLACK_BYTES = 4 << 20    # headroom for compiler-internal scratch
_VMEM_LIMIT_FLOOR = 16 << 20
_VMEM_LIMIT_CAP = 48 << 20     # stay under v7x's 64 MiB physical VMEM
_SMALL_LANES = 128             # lane-dense block carrying the 2 small partial sums


def _ceil_to(x, m):
    return ((x + m - 1) // m) * m


def _to_3d(x):
    """View x as (batch, rows, lanes) without relayouting the tiled (last two) dims."""
    if x.ndim == 0:
        return x.reshape(1, 1, 1)
    if x.ndim == 1:
        return x.reshape(1, 1, x.shape[0])
    if x.ndim == 2:
        return x.reshape(1, *x.shape)          # adds a leading 1: layout-free
    if x.ndim == 3:
        return x
    # Collapsing only the leading (untiled) dims is layout-free (no HBM copy).
    return x.reshape(-1, x.shape[-2], x.shape[-1])


def _to_2d_small(x):
    """2-D view for the tiny duration/pitch tensors (KBs; any copy is negligible)."""
    if x.ndim == 0:
        return x.reshape(1, 1)
    if x.ndim == 1:
        return x.reshape(1, x.shape[0])
    if x.ndim == 2:
        return x
    return x.reshape(-1, x.shape[-1])


def _padded_tile_bytes(rows, cols):
    """Conservative padded-VMEM size of a (rows, cols) tile (charged at 4 B/elem)."""
    return _ceil_to(max(rows, 1), 8) * _ceil_to(max(cols, 1), 128) * 4


def _choose_blocks(B, T, M):
    """Pick (b_block, t_block) targeting ~_TARGET_TILE_BYTES of padded VMEM per tile."""
    row_bytes = _ceil_to(M, 128) * 4
    slab_rows = _ceil_to(max(T, 1), 8)               # padded rows of one batch element
    budget_rows = max(8, _TARGET_TILE_BYTES // row_bytes)

    if T > 8 and budget_rows < slab_rows:
        # One (T, M) slab exceeds the budget: tile inside it (multiple of 8, < T).
        b_block = 1
        t_block = max(8, (budget_rows // 8) * 8)
    else:
        # Whole slabs fit the budget: span several batch elements per tile.
        t_block = T
        b_block = max(1, min(B, budget_rows // max(slab_rows, 1)))

    # Megacore balance (v7x): prefer >= _MIN_TOTAL_BLOCKS grid steps when splittable.
    n_t = pl.cdiv(T, t_block)
    if b_block > 1 and pl.cdiv(B, b_block) * n_t < _MIN_TOTAL_BLOCKS:
        b_block = max(1, pl.cdiv(B, pl.cdiv(_MIN_TOTAL_BLOCKS, n_t)))
    n_b = pl.cdiv(B, b_block)
    if b_block == 1 and t_block > 8 and n_b * n_t < _MIN_TOTAL_BLOCKS:
        cand = _ceil_to(pl.cdiv(T, pl.cdiv(_MIN_TOTAL_BLOCKS, n_b)), 8)
        if cand < T:
            t_block = cand
    return b_block, t_block


def _grid_geometry(x3):
    B, T, M = x3.shape
    b_block, t_block = _choose_blocks(B, T, M)
    n_b = pl.cdiv(B, b_block)
    n_t = pl.cdiv(T, t_block)
    mask_kw = dict(b_block=b_block, t_block=t_block, total_b=B, total_t=T,
                   mask_b=(B % b_block) != 0, mask_t=(T % t_block) != 0)
    return B, T, M, b_block, t_block, n_b, n_t, mask_kw


def _block_err_partial(pred_ref, tgt_ref, *, log1p_target, use_abs,
                       b_block, t_block, total_b, total_t, mask_b, mask_t):
    """Lane-wise partial sum of err(pred, f(tgt)) over one (b_block, t_block, M) tile."""
    p = pred_ref[...].astype(jnp.float32)
    t = tgt_ref[...].astype(jnp.float32)
    if log1p_target:
        t = jnp.log1p(t)
    d = p - t
    err = jnp.abs(d) if use_abs else d * d
    # Ragged final blocks read undefined (but non-faulting) data: mask it to 0.
    if mask_b:
        b_idx = (pl.program_id(0) * b_block
                 + jax.lax.broadcasted_iota(jnp.int32, err.shape, 0))
        err = jnp.where(b_idx < total_b, err, 0.0)
    if mask_t:
        t_idx = (pl.program_id(1) * t_block
                 + jax.lax.broadcasted_iota(jnp.int32, err.shape, 1))
        err = jnp.where(t_idx < total_t, err, 0.0)
    # Reduce batch + sublane axes only; the tiny cross-lane / cross-block
    # reduction is finished (in f32) outside the kernel.
    return jnp.sum(err, axis=(0, 1))[None, None, None, :]


def _fused_kernel(mel_p_ref, mel_t_ref, dur_p_ref, dur_t_ref, pit_p_ref, pit_t_ref,
                  mel_out_ref, small_out_ref, **geom):
    # Mel partial sum for this tile.
    mel_out_ref[...] = _block_err_partial(
        mel_p_ref, mel_t_ref, log1p_target=False, use_abs=False, **geom)

    # Small-loss partial block: zero everywhere, real sums only at grid step (0, 0).
    small_out_ref[...] = jnp.zeros_like(small_out_ref)

    @pl.when(jnp.logical_and(pl.program_id(0) == 0, pl.program_id(1) == 0))
    def _():
        dp = dur_p_ref[...].astype(jnp.float32)
        dt = jnp.log1p(dur_t_ref[...].astype(jnp.float32))
        pp = pit_p_ref[...].astype(jnp.float32)
        pt = jnp.log1p(pit_t_ref[...].astype(jnp.float32))
        dur_sum = jnp.sum(jnp.abs(dp - dt))          # L1 sum (duration)
        pit_sum = jnp.sum((pp - pt) ** 2)            # squared-error sum (pitch)
        lane = jax.lax.broadcasted_iota(jnp.int32, small_out_ref.shape, 3)
        small_out_ref[...] = (jnp.where(lane == 0, dur_sum, 0.0)
                              + jnp.where(lane == 1, pit_sum, 0.0))


def _reduced_kernel(pred_ref, tgt_ref, out_ref, *, log1p_target, use_abs, **geom):
    out_ref[...] = _block_err_partial(
        pred_ref, tgt_ref, log1p_target=log1p_target, use_abs=use_abs, **geom)


def _fused_losses(mel_p, mel_t, dur_p, dur_t, pit_p, pit_t, *, n_mel, n_dur, n_pit):
    """Single pallas_call computing all three losses (small tensors ride along)."""
    B, T, M, b_block, t_block, n_b, n_t, geom = _grid_geometry(mel_p)

    small_raw = sum(int(x.size) * x.dtype.itemsize for x in (dur_p, dur_t, pit_p, pit_t))
    small_padded = sum(_padded_tile_bytes(*x.shape) for x in (dur_p, dur_t, pit_p, pit_t))

    tile_bytes = b_block * _padded_tile_bytes(t_block, M)
    out_bytes = _padded_tile_bytes(1, M) + _padded_tile_bytes(1, _SMALL_LANES)
    vmem_need = (2 * 2 * tile_bytes          # 2 mel inputs, double-buffered
                 + 2 * small_padded          # resident small inputs
                 + 2 * out_bytes             # double-buffered output blocks
                 + _VMEM_SLACK_BYTES)
    vmem_limit = int(min(_VMEM_LIMIT_CAP, max(_VMEM_LIMIT_FLOOR, vmem_need)))

    cost = pl.CostEstimate(
        flops=3 * n_mel + 3 * (n_dur + n_pit),
        transcendentals=n_dur + n_pit,
        bytes_accessed=(mel_p.size * mel_p.dtype.itemsize
                        + mel_t.size * mel_t.dtype.itemsize
                        + small_raw
                        + n_b * n_t * (M + _SMALL_LANES) * 4))

    kernel = functools.partial(_fused_kernel, **geom)

    mel_partials, small_partials = pl.pallas_call(
        kernel,
        out_shape=(jax.ShapeDtypeStruct((n_b, n_t, 1, M), jnp.float32),
                   jax.ShapeDtypeStruct((n_b, n_t, 1, _SMALL_LANES), jnp.float32)),
        grid_spec=pltpu.PrefetchScalarGridSpec(
            num_scalar_prefetch=0,
            grid=(n_b, n_t),
            in_specs=[
                pl.BlockSpec((b_block, t_block, M), lambda bi, ti: (bi, ti, 0)),
                pl.BlockSpec((b_block, t_block, M), lambda bi, ti: (bi, ti, 0)),
                pl.BlockSpec(dur_p.shape, lambda bi, ti: (0, 0)),
                pl.BlockSpec(dur_t.shape, lambda bi, ti: (0, 0)),
                pl.BlockSpec(pit_p.shape, lambda bi, ti: (0, 0)),
                pl.BlockSpec(pit_t.shape, lambda bi, ti: (0, 0)),
            ],
            out_specs=[
                pl.BlockSpec((1, 1, 1, M), lambda bi, ti: (bi, ti, 0, 0)),
                pl.BlockSpec((1, 1, 1, _SMALL_LANES), lambda bi, ti: (bi, ti, 0, 0)),
            ],
        ),
        compiler_params=pltpu.CompilerParams(
            dimension_semantics=("parallel", "parallel"),
            vmem_limit_bytes=vmem_limit),
        cost_estimate=cost,
    )(mel_p, mel_t, dur_p, dur_t, pit_p, pit_t)

    mel_loss = jnp.sum(mel_partials) / jnp.float32(n_mel)
    dur_loss = jnp.sum(small_partials[..., 0]) / jnp.float32(n_dur)
    pit_loss = jnp.sum(small_partials[..., 1]) / jnp.float32(n_pit)
    return mel_loss, dur_loss, pit_loss


def _reduced_loss(pred, target, *, log1p_target, use_abs):
    """mean(err(pred, f(target))) with err in {|.|, (.)^2}, f in {id, log1p}."""
    assert pred.shape == target.shape, (pred.shape, target.shape)
    n = pred.size
    p3, t3 = _to_3d(pred), _to_3d(target)
    B, T, M, b_block, t_block, n_b, n_t, geom = _grid_geometry(p3)

    tile_bytes = b_block * _padded_tile_bytes(t_block, M)
    vmem_need = 2 * 2 * tile_bytes + 2 * _padded_tile_bytes(1, M) + _VMEM_SLACK_BYTES
    vmem_limit = int(min(_VMEM_LIMIT_CAP, max(_VMEM_LIMIT_FLOOR, vmem_need)))

    cost = pl.CostEstimate(
        flops=3 * n,
        transcendentals=n if log1p_target else 0,
        bytes_accessed=(p3.size * p3.dtype.itemsize + t3.size * t3.dtype.itemsize
                        + n_b * n_t * M * 4))

    kernel = functools.partial(_reduced_kernel, log1p_target=log1p_target,
                               use_abs=use_abs, **geom)

    partials = pl.pallas_call(
        kernel,
        out_shape=jax.ShapeDtypeStruct((n_b, n_t, 1, M), jnp.float32),
        grid_spec=pltpu.PrefetchScalarGridSpec(
            num_scalar_prefetch=0,
            grid=(n_b, n_t),
            in_specs=[pl.BlockSpec((b_block, t_block, M), lambda bi, ti: (bi, ti, 0)),
                      pl.BlockSpec((b_block, t_block, M), lambda bi, ti: (bi, ti, 0))],
            out_specs=pl.BlockSpec((1, 1, 1, M), lambda bi, ti: (bi, ti, 0, 0)),
        ),
        compiler_params=pltpu.CompilerParams(
            dimension_semantics=("parallel", "parallel"),
            vmem_limit_bytes=vmem_limit),
        cost_estimate=cost,
    )(p3, t3)
    return jnp.sum(partials) / jnp.float32(n)


def pfastspeech_loss(batch, predicts):
    """JAX/Pallas equivalent of PFastSpeechLoss.forward(batch, predicts)."""
    mel_p = _to_3d(predicts["mel_spec"])
    mel_t = _to_3d(batch["mel_target"])
    assert mel_p.shape == mel_t.shape, (mel_p.shape, mel_t.shape)

    dur_p, dur_t = _to_2d_small(predicts["duration"]), _to_2d_small(batch["duration"])
    pit_p, pit_t = _to_2d_small(predicts["pitches"]), _to_2d_small(batch["pitches"])
    assert dur_p.shape == dur_t.shape and pit_p.shape == pit_t.shape

    small_raw = sum(int(x.size) * x.dtype.itemsize for x in (dur_p, dur_t, pit_p, pit_t))

    losses = {}
    if small_raw <= _SMALL_FUSED_LIMIT:
        mel_loss, dur_loss, pit_loss = _fused_losses(
            mel_p, mel_t, dur_p, dur_t, pit_p, pit_t,
            n_mel=predicts["mel_spec"].size,
            n_dur=predicts["duration"].size,
            n_pit=predicts["pitches"].size)
        losses["mel_loss"] = mel_loss
        losses["duration_loss"] = dur_loss
        losses["pitch_loss"] = pit_loss
    else:
        # Unusually large duration/pitch tensors: tile each reduction separately.
        losses["mel_loss"] = _reduced_loss(predicts["mel_spec"], batch["mel_target"],
                                           log1p_target=False, use_abs=False)
        losses["duration_loss"] = _reduced_loss(predicts["duration"], batch["duration"],
                                                log1p_target=True, use_abs=True)
        losses["pitch_loss"] = _reduced_loss(predicts["pitches"], batch["pitches"],
                                             log1p_target=True, use_abs=False)
    return losses


if __name__ == "__main__":
    key = jax.random.PRNGKey(0)
    k1, k2, k3, k4, k5, k6 = jax.random.split(key, 6)

    # Small synthetic shapes; T_MEL=37 deliberately non-multiple of the chosen
    # t_block so the ragged-block mask path is exercised.
    B, T_MEL, N_MELS, T_TXT = 2, 37, 80, 13

    batch = {
        "mel_target": jax.random.normal(k1, (B, T_MEL, N_MELS), jnp.float32),
        "duration": jax.random.randint(k2, (B, T_TXT), 0, 10).astype(jnp.int32),
        "pitches": jax.random.uniform(k3, (B, T_TXT), jnp.float32, 0.0, 5.0),
    }
    predicts = {
        "mel_spec": jax.random.normal(k4, (B, T_MEL, N_MELS), jnp.float32),
        "duration": jax.random.normal(k5, (B, T_TXT), jnp.float32),
        "pitches": jax.random.normal(k6, (B, T_TXT), jnp.float32),
    }

    losses = jax.block_until_ready(pfastspeech_loss(batch, predicts))

    # Pure-JAX reference check.
    ref_mel = jnp.mean((predicts["mel_spec"] - batch["mel_target"]) ** 2)
    ref_dur = jnp.mean(
        jnp.abs(predicts["duration"]
                - jnp.log1p(batch["duration"].astype(jnp.float32))))
    ref_pitch = jnp.mean((predicts["pitches"] - jnp.log1p(batch["pitches"])) ** 2)

    assert jnp.allclose(losses["mel_loss"], ref_mel, rtol=1e-5, atol=1e-5)
    assert jnp.allclose(losses["duration_loss"], ref_dur, rtol=1e-5, atol=1e-5)
    assert jnp.allclose(losses["pitch_loss"], ref_pitch, rtol=1e-5, atol=1e-5)

    print("KERNEL_OK")
</pallas_src>

<mosaic_0001>
module attributes {stable_mosaic.version = 11 : i64} {
  func.func @_fused_kernel(%arg0: i32, %arg1: i32, %arg2: memref<1x24x80xf32, #tpu.memory_space<vmem>>, %arg3: memref<1x24x80xf32, #tpu.memory_space<vmem>>, %arg4: memref<2x13xf32, #tpu.memory_space<vmem>>, %arg5: memref<2x13xi32, #tpu.memory_space<vmem>>, %arg6: memref<2x13xf32, #tpu.memory_space<vmem>>, %arg7: memref<2x13xf32, #tpu.memory_space<vmem>>, %arg8: memref<1x1x1x80xf32, #tpu.memory_space<vmem>>, %arg9: memref<1x1x1x128xf32, #tpu.memory_space<vmem>>) attributes {dimension_semantics = [#tpu.dimension_semantics<parallel>, #tpu.dimension_semantics<parallel>], iteration_bounds = array<i64: 2, 2>, scalar_prefetch = 0 : i64, scratch_operands = 0 : i64, tpu.core_type = #tpu.core_type<tc>, window_params = [{transform_indices = @transform_0, window_bounds = array<i64: 1, 24, 80>}, {transform_indices = @transform_1, window_bounds = array<i64: 1, 24, 80>}, {pipeline_mode = #tpu.pipeline_mode<synchronous>, transform_indices = @transform_2, window_bounds = array<i64: 2, 13>}, {pipeline_mode = #tpu.pipeline_mode<synchronous>, transform_indices = @transform_3, window_bounds = array<i64: 2, 13>}, {pipeline_mode = #tpu.pipeline_mode<synchronous>, transform_indices = @transform_4, window_bounds = array<i64: 2, 13>}, {pipeline_mode = #tpu.pipeline_mode<synchronous>, transform_indices = @transform_5, window_bounds = array<i64: 2, 13>}, {transform_indices = @transform_6, window_bounds = array<i64: 1, 1, 1, 80>}, {transform_indices = @transform_7, window_bounds = array<i64: 1, 1, 1, 128>}]} {
    %c0 = arith.constant 0 : index
    %c0_0 = arith.constant 0 : index
    %c0_1 = arith.constant 0 : index
    %0 = vector.load %arg2[%c0, %c0_0, %c0_1] : memref<1x24x80xf32, #tpu.memory_space<vmem>>, vector<1x24x80xf32>
    %c0_2 = arith.constant 0 : index
    %c0_3 = arith.constant 0 : index
    %c0_4 = arith.constant 0 : index
    %1 = vector.load %arg3[%c0_2, %c0_3, %c0_4] : memref<1x24x80xf32, #tpu.memory_space<vmem>>, vector<1x24x80xf32>
    %2 = arith.subf %0, %1 : vector<1x24x80xf32>
    %3 = arith.mulf %2, %2 : vector<1x24x80xf32>
    %c24_i32 = arith.constant 24 : i32
    %4 = arith.muli %arg1, %c24_i32 : i32
    %5 = tpu.iota {dimensions = array<i32: 1>} : vector<1x24x80xi32>
    %6 = vector.broadcast %4 : i32 to vector<1x24x80xi32>
    %7 = arith.addi %6, %5 : vector<1x24x80xi32>
    %c37_i32 = arith.constant 37 : i32
    %8 = vector.broadcast %c37_i32 : i32 to vector<1x24x80xi32>
    %9 = arith.cmpi slt, %7, %8 : vector<1x24x80xi32>
    %cst = arith.constant 0.000000e+00 : f32
    %10 = vector.broadcast %cst : f32 to vector<1x24x80xf32>
    %11 = arith.select %9, %3, %10 : vector<1x24x80xi1>, vector<1x24x80xf32>
    %cst_5 = arith.constant dense<0.000000e+00> : vector<80xf32>
    %12 = vector.multi_reduction <add>, %11, %cst_5 [0, 1] : vector<1x24x80xf32> to vector<80xf32>
    %13 = vector.shape_cast %12 : vector<80xf32> to vector<1x1x1x80xf32>
    %c0_6 = arith.constant 0 : index
    %c0_7 = arith.constant 0 : index
    %c0_8 = arith.constant 0 : index
    %c0_9 = arith.constant 0 : index
    %14 = vector.load %arg8[%c0_6, %c0_7, %c0_8, %c0_9] : memref<1x1x1x80xf32, #tpu.memory_space<vmem>>, vector<1x1x1x80xf32>
    tpu.vector_store %arg8[%c0_6, %c0_7, %c0_8, %c0_9], %13 {strides = array<i32>} : memref<1x1x1x80xf32, #tpu.memory_space<vmem>>, vector<1x1x1x80xf32>,
    %cst_10 = arith.constant 0.000000e+00 : f32
    %15 = vector.broadcast %cst_10 : f32 to vector<1x1x1x128xf32>
    %c0_11 = arith.constant 0 : index
    %c0_12 = arith.constant 0 : index
    %c0_13 = arith.constant 0 : index
    %c0_14 = arith.constant 0 : index
    %16 = vector.load %arg9[%c0_11, %c0_12, %c0_13, %c0_14] : memref<1x1x1x128xf32, #tpu.memory_space<vmem>>, vector<1x1x1x128xf32>
    tpu.vector_store %arg9[%c0_11, %c0_12, %c0_13, %c0_14], %15 {strides = array<i32>} : memref<1x1x1x128xf32, #tpu.memory_space<vmem>>, vector<1x1x1x128xf32>,
    %c0_i32 = arith.constant 0 : i32
    %17 = arith.cmpi eq, %arg0, %c0_i32 : i32
    %c0_i32_15 = arith.constant 0 : i32
    %18 = arith.cmpi eq, %arg1, %c0_i32_15 : i32
    %19 = arith.andi %17, %18 : i1
    %20 = arith.extui %19 : i1 to i32
    %c0_i32_16 = arith.constant 0 : i32
    %21 = arith.cmpi ne, %20, %c0_i32_16 : i32
    scf.if %21 {
      %c0_17 = arith.constant 0 : index
      %c0_18 = arith.constant 0 : index
      %22 = vector.load %arg4[%c0_17, %c0_18] : memref<2x13xf32, #tpu.memory_space<vmem>>, vector<2x13xf32>
      %c0_19 = arith.constant 0 : index
      %c0_20 = arith.constant 0 : index
      %23 = vector.load %arg5[%c0_19, %c0_20] : memref<2x13xi32, #tpu.memory_space<vmem>>, vector<2x13xi32>
      %24 = arith.sitofp %23 : vector<2x13xi32> to vector<2x13xf32>
      %25 = math.log1p %24 : vector<2x13xf32>
      %c0_21 = arith.constant 0 : index
      %c0_22 = arith.constant 0 : index
      %26 = vector.load %arg6[%c0_21, %c0_22] : memref<2x13xf32, #tpu.memory_space<vmem>>, vector<2x13xf32>
      %c0_23 = arith.constant 0 : index
      %c0_24 = arith.constant 0 : index
      %27 = vector.load %arg7[%c0_23, %c0_24] : memref<2x13xf32, #tpu.memory_space<vmem>>, vector<2x13xf32>
      %28 = math.log1p %27 : vector<2x13xf32>
      %29 = arith.subf %22, %25 : vector<2x13xf32>
      %30 = math.absf %29 : vector<2x13xf32>
      %31 = vector.shape_cast %30 : vector<2x13xf32> to vector<1x2x13xf32>
      %cst_25 = arith.constant dense<0.000000e+00> : vector<1xf32>
      %32 = vector.multi_reduction <add>, %31, %cst_25 [1, 2] : vector<1x2x13xf32> to vector<1xf32>
      %33 = vector.shape_cast %32 : vector<1xf32> to vector<1x1x1xf32>
      %34 = vector.extract %33[0, 0, 0] : f32 from vector<1x1x1xf32>
      %35 = arith.subf %26, %28 : vector<2x13xf32>
      %36 = arith.mulf %35, %35 : vector<2x13xf32>
      %37 = vector.shape_cast %36 : vector<2x13xf32> to vector<1x2x13xf32>
      %cst_26 = arith.constant dense<0.000000e+00> : vector<1xf32>
      %38 = vector.multi_reduction <add>, %37, %cst_26 [1, 2] : vector<1x2x13xf32> to vector<1xf32>
      %39 = vector.shape_cast %38 : vector<1xf32> to vector<1x1x1xf32>
      %40 = vector.extract %39[0, 0, 0] : f32 from vector<1x1x1xf32>
      %41 = tpu.iota {dimensions = array<i32: 3>} : vector<1x1x1x128xi32>
      %c0_i32_27 = arith.constant 0 : i32
      %42 = vector.broadcast %c0_i32_27 : i32 to vector<1x1x1x128xi32>
      %43 = arith.cmpi eq, %41, %42 : vector<1x1x1x128xi32>
      %cst_28 = arith.constant 0.000000e+00 : f32
      %44 = vector.broadcast %34 : f32 to vector<1x1x1x128xf32>
      %45 = vector.broadcast %cst_28 : f32 to vector<1x1x1x128xf32>
      %46 = arith.select %43, %44, %45 : vector<1x1x1x128xi1>, vector<1x1x1x128xf32>
      %c1_i32 = arith.constant 1 : i32
      %47 = vector.broadcast %c1_i32 : i32 to vector<1x1x1x128xi32>
      %48 = arith.cmpi eq, %41, %47 : vector<1x1x1x128xi32>
      %cst_29 = arith.constant 0.000000e+00 : f32
      %49 = vector.broadcast %40 : f32 to vector<1x1x1x128xf32>
      %50 = vector.broadcast %cst_29 : f32 to vector<1x1x1x128xf32>
      %51 = arith.select %48, %49, %50 : vector<1x1x1x128xi1>, vector<1x1x1x128xf32>
      %52 = arith.addf %46, %51 : vector<1x1x1x128xf32>
      %c0_30 = arith.constant 0 : index
      %c0_31 = arith.constant 0 : index
      %c0_32 = arith.constant 0 : index
      %c0_33 = arith.constant 0 : index
      %53 = vector.load %arg9[%c0_30, %c0_31, %c0_32, %c0_33] : memref<1x1x1x128xf32, #tpu.memory_space<vmem>>, vector<1x1x1x128xf32>
      tpu.vector_store %arg9[%c0_30, %c0_31, %c0_32, %c0_33], %52 {strides = array<i32>} : memref<1x1x1x128xf32, #tpu.memory_space<vmem>>, vector<1x1x1x128xf32>,
    } else {
    }
    return
  }
  func.func @transform_0(%arg0: i32, %arg1: i32) -> (i32, i32, i32) {
    %c0_i32 = arith.constant 0 : i32
    %c0_i32_0 = arith.constant 0 : i32
    return %arg0, %arg1, %c0_i32 : i32, i32, i32
  }
  func.func @transform_1(%arg0: i32, %arg1: i32) -> (i32, i32, i32) {
    %c0_i32 = arith.constant 0 : i32
    %c0_i32_0 = arith.constant 0 : i32
    return %arg0, %arg1, %c0_i32 : i32, i32, i32
  }
  func.func @transform_2(%arg0: i32, %arg1: i32) -> (i32, i32) {
    %c0_i32 = arith.constant 0 : i32
    %c0_i32_0 = arith.constant 0 : i32
    %c0_i32_1 = arith.constant 0 : i32
    return %c0_i32, %c0_i32_0 : i32, i32
  }
  func.func @transform_3(%arg0: i32, %arg1: i32) -> (i32, i32) {
    %c0_i32 = arith.constant 0 : i32
    %c0_i32_0 = arith.constant 0 : i32
    %c0_i32_1 = arith.constant 0 : i32
    return %c0_i32, %c0_i32_0 : i32, i32
  }
  func.func @transform_4(%arg0: i32, %arg1: i32) -> (i32, i32) {
    %c0_i32 = arith.constant 0 : i32
    %c0_i32_0 = arith.constant 0 : i32
    %c0_i32_1 = arith.constant 0 : i32
    return %c0_i32, %c0_i32_0 : i32, i32
  }
  func.func @transform_5(%arg0: i32, %arg1: i32) -> (i32, i32) {
    %c0_i32 = arith.constant 0 : i32
    %c0_i32_0 = arith.constant 0 : i32
    %c0_i32_1 = arith.constant 0 : i32
    return %c0_i32, %c0_i32_0 : i32, i32
  }
  func.func @transform_6(%arg0: i32, %arg1: i32) -> (i32, i32, i32, i32) {
    %c0_i32 = arith.constant 0 : i32
    %c0_i32_0 = arith.constant 0 : i32
    %c0_i32_1 = arith.constant 0 : i32
    return %arg0, %arg1, %c0_i32, %c0_i32_0 : i32, i32, i32, i32
  }
  func.func @transform_7(%arg0: i32, %arg1: i32) -> (i32, i32, i32, i32) {
    %c0_i32 = arith.constant 0 : i32
    %c0_i32_0 = arith.constant 0 : i32
    %c0_i32_1 = arith.constant 0 : i32
    return %arg0, %arg1, %c0_i32, %c0_i32_0 : i32, i32, i32, i32
  }
}

</mosaic_0001>

<llo_original>
// kernel: tpu_custom_call.1
$region0: #{tpu_custom_call.1}
  #allocation0 [shape = 'u32[]', space=smem, size = 0x4, offset = 0x4, fixed_abs, tag = 'smem constant byte address 0x4 - core index']
  #allocation1 [shape = 'u32[72,128]{1,0:T(1,128)}', space=vmem, size = 0x9000, scoped, tag = 'internal scratch']
  %s0 = inlined_call_operand.vmem [shape: f32[2,37,80], index: 0, kind: input, shape index: {}]
  %s1 = inlined_call_operand.vmem [shape: f32[2,37,80], index: 1, kind: input, shape index: {}]
  %s2 = inlined_call_operand.vmem [shape: f32[2,13], index: 2, kind: input, shape index: {}]
  %s3 = inlined_call_operand.vmem [shape: s32[2,13], index: 3, kind: input, shape index: {}]
  %s4 = inlined_call_operand.vmem [shape: f32[2,13], index: 4, kind: input, shape index: {}]
  %s5 = inlined_call_operand.vmem [shape: f32[2,13], index: 5, kind: input, shape index: {}]
  %s6 = inlined_call_operand.hbm [shape: f32[2,2,1,80], index: 6, kind: output, shape index: {0}]
  %s7 = inlined_call_operand.hbm [shape: f32[2,2,1,128], index: 7, kind: output, shape index: {1}]
  %8 = xla_tuple %s6, %s7
  %s9 = sld [smem:[#allocation0]]
  $region69: #{tpu_custom_call.1} parent=0
    _
  %s11 = ssub.s32 1, %s9
  %s12 = scalar_select 0, %s11, %s9
  $region1: #{tpu_custom_call.1} parent=0
    #allocation2 [shape = 'u8[1024]{0}', space=vmem, size = 0x400, scoped, tag = 'output window, operand 0']
    #allocation3 [shape = 's32[2]{0}', space=sflag, size = 0x8, scoped, tag = 'scoped memory for tpu_custom_call.1']
    #allocation4 [shape = 'u8[1024]{0}', space=vmem, size = 0x400, scoped, tag = 'output window, operand 1']
    #allocation5 [shape = 's32[2]{0}', space=sflag, size = 0x8, scoped, tag = 'scoped memory for tpu_custom_call.1']
    %13 = vsyncpa [#allocation3], 0
    %s14 = scalar_lea.sflag [#allocation3], 1
    %15 = vsyncpa %s14, 0
    %16 = vsyncpa [#allocation5], 0
    %s17 = scalar_lea.sflag [#allocation5], 1
    %18 = vsyncpa %s17, 0
    loop: start=0, step=1, limit=6
    $region2: #{tpu_custom_call.1} parent=1 // loop_pre_header
      _
    $region3: #{tpu_custom_call.1} parent=1 // loop_header
      %s20 = sphi 0, %s24
      %p21 = scmp.ge.s32.totalorder %s20, 6
      %s27 = sphi 0, %s39
      %s28 = sphi 0, %s35
      %s29 = sphi 0, %s27
      %s30 = sphi 0, %s28
      %s31 = sphi 0, %s29
      %s32 = sphi 0, %s30
      %s44 = sphi 0, %s46
      %s47 = sphi 0, %s44
      %s48 = sphi 0, %s47
      %s64 = sphi 0, %s48
      %s72 = sphi 0, %s74
      %s75 = sphi 0, %s72
      %s76 = sphi 0, %s75
      %s92 = sphi 0, %s76
      %s96 = sphi 0, %s96
      %s98 = sphi 0, %s96
      %s99 = sphi 0, %s98
      %s113 = sphi 0, %s99
      %s117 = sphi 0, %s117
      %s119 = sphi 0, %s117
      %s120 = sphi 0, %s119
      %s134 = sphi 0, %s120
      %s138 = sphi 0, %s138
      %s140 = sphi 0, %s138
      %s141 = sphi 0, %s140
      %s155 = sphi 0, %s141
      %s159 = sphi 0, %s159
      %s161 = sphi 0, %s159
      %s162 = sphi 0, %s161
      %s176 = sphi 0, %s162
      %s184 = sphi 0, %s186
      %s187 = sphi 0, %s184
      %s188 = sphi 0, %s187
      %s204 = sphi 0, %s188
      %s212 = sphi 0, %s214
      %s215 = sphi 0, %s212
      %s216 = sphi 0, %s215
      %s232 = sphi 0, %s216
    $region4: #{tpu_custom_call.1} parent=1 // loop_header_branch
      %23 = sbr.rel (%p21) target = $region8
    $region5: #{tpu_custom_call.1} parent=1 // loop_body
      %s25 = ssub.s32 %s20, 1
      %s26 = ssub.s32 %s20, 2
      %s33 = sadd.s32 1, %s28
      %p34 = scmp.ge.s32.totalorder %s33, 2
      %s35 = scalar_select %p34, 0, %s33
      %s36 = sadd.s32 1, %s27
      %s37 = scalar_select %p34, %s36, %s27
      %p38 = scmp.ge.s32.totalorder %s37, 2
      %s39 = scalar_select %p38, 0, %s37
      %s40 = ssub.s32 %s27, %s39
      %s41 = ssub.s32 %s28, %s35
      %s42 = sor.u32 %s40, %s41
      %p43 = scmp.eq.s32.totalorder %s42, 0
      %s45 = sadd.s32 %s44, 1
      %s46 = scalar_select %p43, %s44, %s45
      %p49 = pneg %p43
      %p50 = scmp.eq.s32.totalorder %s20, 3
      %p51 = por %p49, %p50
      %p52 = scmp.ne.s32.totalorder %s44, %s47
      %p53 = scmp.eq.s32.totalorder %s20, 0
      %p54 = por %p52, %p53
      %p55 = scmp.ne.s32.totalorder %s44, %s47
      %p56 = scmp.eq.s32.totalorder %s25, 3
      %p57 = por %p55, %p56
      %p58 = scmp.ne.s32.totalorder %s47, %s48
      %p59 = scmp.eq.s32.totalorder %s25, 0
      %p60 = por %p58, %p59
      %p61 = scmp.ne.s32.totalorder %s47, %s48
      %p62 = scmp.eq.s32.totalorder %s26, 3
      %p63 = por %p61, %p62
      %p65 = scmp.ne.s32.totalorder %s48, %s64
      %p66 = scmp.eq.s32.totalorder %s26, 0
      %p67 = por %p65, %p66
      %s68 = ssub.s32 %s27, %s39
      %s69 = ssub.s32 %s28, %s35
      %s70 = sor.u32 %s68, %s69
      %p71 = scmp.eq.s32.totalorder %s70, 0
      %s73 = sadd.s32 %s72, 1
      %s74 = scalar_select %p71, %s72, %s73
      %p77 = pneg %p71
      %p78 = scmp.eq.s32.totalorder %s20, 3
      %p79 = por %p77, %p78
      %p80 = scmp.ne.s32.totalorder %s72, %s75
      %p81 = scmp.eq.s32.totalorder %s20, 0
      %p82 = por %p80, %p81
      %p83 = scmp.ne.s32.totalorder %s72, %s75
      %p84 = scmp.eq.s32.totalorder %s25, 3
      %p85 = por %p83, %p84
      %p86 = scmp.ne.s32.totalorder %s75, %s76
      %p87 = scmp.eq.s32.totalorder %s25, 0
      %p88 = por %p86, %p87
      %p89 = scmp.ne.s32.totalorder %s75, %s76
      %p90 = scmp.eq.s32.totalorder %s26, 3
      %p91 = por %p89, %p90
      %p93 = scmp.ne.s32.totalorder %s76, %s92
      %p94 = scmp.eq.s32.totalorder %s26, 0
      %p95 = por %p93, %p94
      %s97 = sadd.s32 %s96, 1
      %p100 = scmp.eq.s32.totalorder %s20, 3
      %p101 = scmp.ne.s32.totalorder %s96, %s98
      %p102 = scmp.eq.s32.totalorder %s20, 0
      %p103 = por %p101, %p102
      %p104 = scmp.ne.s32.totalorder %s96, %s98
      %p105 = scmp.eq.s32.totalorder %s25, 3
      %p106 = por %p104, %p105
      %p107 = scmp.ne.s32.totalorder %s98, %s99
      %p108 = scmp.eq.s32.totalorder %s25, 0
      %p109 = por %p107, %p108
      %p110 = scmp.ne.s32.totalorder %s98, %s99
      %p111 = scmp.eq.s32.totalorder %s26, 3
      %p112 = por %p110, %p111
      %p114 = scmp.ne.s32.totalorder %s99, %s113
      %p115 = scmp.eq.s32.totalorder %s26, 0
      %p116 = por %p114, %p115
      %s118 = sadd.s32 %s117, 1
      %p121 = scmp.eq.s32.totalorder %s20, 3
      %p122 = scmp.ne.s32.totalorder %s117, %s119
      %p123 = scmp.eq.s32.totalorder %s20, 0
      %p124 = por %p122, %p123
      %p125 = scmp.ne.s32.totalorder %s117, %s119
      %p126 = scmp.eq.s32.totalorder %s25, 3
      %p127 = por %p125, %p126
      %p128 = scmp.ne.s32.totalorder %s119, %s120
      %p129 = scmp.eq.s32.totalorder %s25, 0
      %p130 = por %p128, %p129
      %p131 = scmp.ne.s32.totalorder %s119, %s120
      %p132 = scmp.eq.s32.totalorder %s26, 3
      %p133 = por %p131, %p132
      %p135 = scmp.ne.s32.totalorder %s120, %s134
      %p136 = scmp.eq.s32.totalorder %s26, 0
      %p137 = por %p135, %p136
      %s139 = sadd.s32 %s138, 1
      %p142 = scmp.eq.s32.totalorder %s20, 3
      %p143 = scmp.ne.s32.totalorder %s138, %s140
      %p144 = scmp.eq.s32.totalorder %s20, 0
      %p145 = por %p143, %p144
      %p146 = scmp.ne.s32.totalorder %s138, %s140
      %p147 = scmp.eq.s32.totalorder %s25, 3
      %p148 = por %p146, %p147
      %p149 = scmp.ne.s32.totalorder %s140, %s141
      %p150 = scmp.eq.s32.totalorder %s25, 0
      %p151 = por %p149, %p150
      %p152 = scmp.ne.s32.totalorder %s140, %s141
      %p153 = scmp.eq.s32.totalorder %s26, 3
      %p154 = por %p152, %p153
      %p156 = scmp.ne.s32.totalorder %s141, %s155
      %p157 = scmp.eq.s32.totalorder %s26, 0
      %p158 = por %p156, %p157
      %s160 = sadd.s32 %s159, 1
      %p163 = scmp.eq.s32.totalorder %s20, 3
      %p164 = scmp.ne.s32.totalorder %s159, %s161
      %p165 = scmp.eq.s32.totalorder %s20, 0
      %p166 = por %p164, %p165
      %p167 = scmp.ne.s32.totalorder %s159, %s161
      %p168 = scmp.eq.s32.totalorder %s25, 3
      %p169 = por %p167, %p168
      %p170 = scmp.ne.s32.totalorder %s161, %s162
      %p171 = scmp.eq.s32.totalorder %s25, 0
      %p172 = por %p170, %p171
      %p173 = scmp.ne.s32.totalorder %s161, %s162
      %p174 = scmp.eq.s32.totalorder %s26, 3
      %p175 = por %p173, %p174
      %p177 = scmp.ne.s32.totalorder %s162, %s176
      %p178 = scmp.eq.s32.totalorder %s26, 0
      %p179 = por %p177, %p178
      %s180 = ssub.s32 %s27, %s39
      %s181 = ssub.s32 %s28, %s35
      %s182 = sor.u32 %s180, %s181
      %p183 = scmp.eq.s32.totalorder %s182, 0
      %s185 = sadd.s32 %s184, 1
      %s186 = scalar_select %p183, %s184, %s185
      %p189 = pneg %p183
      %p190 = scmp.eq.s32.totalorder %s20, 3
      %p191 = por %p189, %p190
      %p192 = scmp.ne.s32.totalorder %s184, %s187
      %p193 = scmp.eq.s32.totalorder %s20, 0
      %p194 = por %p192, %p193
      %p195 = scmp.ne.s32.totalorder %s184, %s187
      %p196 = scmp.eq.s32.totalorder %s25, 3
      %p197 = por %p195, %p196
      %p198 = scmp.ne.s32.totalorder %s187, %s188
      %p199 = scmp.eq.s32.totalorder %s25, 0
      %p200 = por %p198, %p199
      %p201 = scmp.ne.s32.totalorder %s187, %s188
      %p202 = scmp.eq.s32.totalorder %s26, 3
      %p203 = por %p201, %p202
      %p205 = scmp.ne.s32.totalorder %s188, %s204
      %p206 = scmp.eq.s32.totalorder %s26, 0
      %p207 = por %p205, %p206
      %s208 = ssub.s32 %s27, %s39
      %s209 = ssub.s32 %s28, %s35
      %s210 = sor.u32 %s208, %s209
      %p211 = scmp.eq.s32.totalorder %s210, 0
      %s213 = sadd.s32 %s212, 1
      %s214 = scalar_select %p211, %s212, %s213
      %p217 = pneg %p211
      %p218 = scmp.eq.s32.totalorder %s20, 3
      %p219 = por %p217, %p218
      %p220 = scmp.ne.s32.totalorder %s212, %s215
      %p221 = scmp.eq.s32.totalorder %s20, 0
      %p222 = por %p220, %p221
      %p223 = scmp.ne.s32.totalorder %s212, %s215
      %p224 = scmp.eq.s32.totalorder %s25, 3
      %p225 = por %p223, %p224
      %p226 = scmp.ne.s32.totalorder %s215, %s216
      %p227 = scmp.eq.s32.totalorder %s25, 0
      %p228 = por %p226, %p227
      %p229 = scmp.ne.s32.totalorder %s215, %s216
      %p230 = scmp.eq.s32.totalorder %s26, 3
      %p231 = por %p229, %p230
      %p233 = scmp.ne.s32.totalorder %s216, %s232
      %p234 = scmp.eq.s32.totalorder %s26, 0
      %p235 = por %p233, %p234
      %p236 = scmp.le.s32.totalorder 1, %s20
      %p237 = scmp.lt.s32.totalorder %s20, 5
      %p238 = pnand %p236, %p237
      %p239 = pneg %p238
      // Predicated region
      $region9: #{tpu_custom_call.1} parent=5 // pred_check
        _
      $region10: #{tpu_custom_call.1} parent=5 // pred_check_branch
        %241 = sbr.rel (%p238) target = $region12
      $region11: #{tpu_custom_call.1} parent=5 // pred_region
        %s242 = ssub.s32 %s20, 1
        // Predicated region
        $region13: #{tpu_custom_call.1} parent=11 // pred_check
          %p243 = pneg %p109
        $region14: #{tpu_custom_call.1} parent=11 // pred_check_branch
          %245 = sbr.rel (%p243) target = $region16
        $region15: #{tpu_custom_call.1} parent=11 // pred_region
          _
        $region16: #{tpu_custom_call.1} parent=11 // pred_fallthru
          _
        // Predicated region
        $region17: #{tpu_custom_call.1} parent=11 // pred_check
          %p246 = pneg %p130
        $region18: #{tpu_custom_call.1} parent=11 // pred_check_branch
          %248 = sbr.rel (%p246) target = $region20
        $region19: #{tpu_custom_call.1} parent=11 // pred_region
          _
        $region20: #{tpu_custom_call.1} parent=11 // pred_fallthru
          _
        // Predicated region
        $region21: #{tpu_custom_call.1} parent=11 // pred_check
          %p249 = pneg %p151
        $region22: #{tpu_custom_call.1} parent=11 // pred_check_branch
          %251 = sbr.rel (%p249) target = $region24
        $region23: #{tpu_custom_call.1} parent=11 // pred_region
          _
        $region24: #{tpu_custom_call.1} parent=11 // pred_fallthru
          _
        // Predicated region
        $region25: #{tpu_custom_call.1} parent=11 // pred_check
          %p252 = pneg %p172
        $region26: #{tpu_custom_call.1} parent=11 // pred_check_branch
          %254 = sbr.rel (%p252) target = $region28
        $region27: #{tpu_custom_call.1} parent=11 // pred_region
          _
        $region28: #{tpu_custom_call.1} parent=11 // pred_fallthru
          _
      $region12: #{tpu_custom_call.1} parent=5 // pred_fallthru
        _
      %p255 = scmp.lt.s32.totalorder %s20, 4
      // Predicated region
      $region29: #{tpu_custom_call.1} parent=5 // pred_check
        %p256 = pneg %p255
      $region30: #{tpu_custom_call.1} parent=5 // pred_check_branch
        %258 = sbr.rel (%p256) target = $region32
      $region31: #{tpu_custom_call.1} parent=5 // pred_region
        // Predicated region
        $region33: #{tpu_custom_call.1} parent=31 // pred_check
          %p259 = pneg %p54
        $region34: #{tpu_custom_call.1} parent=31 // pred_check_branch
          %261 = sbr.rel (%p259) target = $region36
        $region35: #{tpu_custom_call.1} parent=31 // pred_region
          %s262 = smul.u32 3, %s28
          %s263 = ssub.s32 5, %s262
          %p264 = scmp.lt.s32.totalorder %s263, 3
          %s265 = scalar_select %p264, %s263, 3
          %s266 = smul.u32 8, %s265
          %p267 = scmp.lt.s32.totalorder %s27, 1
          %s268 = scalar_select %p267, %s27, 1
          %p269 = scmp.lt.s32.totalorder %s262, 4
          %s270 = scalar_select %p269, %s262, 4
          %s271 = smul.addr %s268, 5
          %s272 = sadd.s32 %s270, %s271
          %s273 = smul.addr %s272, 8
          %s274 = scalar_lea.vmem %s0, %s273
          %s275 = smul.u32 3, %s28
          %s276 = ssub.s32 5, %s275
          %p277 = scmp.lt.s32.totalorder %s276, 3
          %s278 = scalar_select %p277, %s276, 3
          %s279 = smul.u32 8, %s278
        $region36: #{tpu_custom_call.1} parent=31 // pred_fallthru
          _
        // Predicated region
        $region37: #{tpu_custom_call.1} parent=31 // pred_check
          %p280 = pneg %p82
        $region38: #{tpu_custom_call.1} parent=31 // pred_check_branch
          %282 = sbr.rel (%p280) target = $region40
        $region39: #{tpu_custom_call.1} parent=31 // pred_region
          %s283 = smul.u32 3, %s28
          %s284 = ssub.s32 5, %s283
          %p285 = scmp.lt.s32.totalorder %s284, 3
          %s286 = scalar_select %p285, %s284, 3
          %s287 = smul.u32 8, %s286
          %p288 = scmp.lt.s32.totalorder %s27, 1
          %s289 = scalar_select %p288, %s27, 1
          %p290 = scmp.lt.s32.totalorder %s283, 4
          %s291 = scalar_select %p290, %s283, 4
          %s292 = smul.addr %s289, 5
          %s293 = sadd.s32 %s291, %s292
          %s294 = smul.addr %s293, 8
          %s295 = scalar_lea.vmem %s1, %s294
          %s296 = smul.u32 3, %s28
          %s297 = ssub.s32 5, %s296
          %p298 = scmp.lt.s32.totalorder %s297, 3
          %s299 = scalar_select %p298, %s297, 3
          %s300 = smul.u32 8, %s299
        $region40: #{tpu_custom_call.1} parent=31 // pred_fallthru
          _
      $region32: #{tpu_custom_call.1} parent=5 // pred_fallthru
        _
      %p301 = scmp.le.s32.totalorder 1, %s20
      %p302 = scmp.lt.s32.totalorder %s20, 5
      %p303 = pnand %p301, %p302
      %p304 = pneg %p303
      // Predicated region
      $region41: #{tpu_custom_call.1} parent=5 // pred_check
        _
      $region42: #{tpu_custom_call.1} parent=5 // pred_check_branch
        %306 = sbr.rel (%p303) target = $region44
      $region43: #{tpu_custom_call.1} parent=5 // pred_region
        %s307 = ssub.s32 %s20, 1
        %s308 = smul.u32 3, %s30
        %s309 = ssub.s32 5, %s308
        %p310 = scmp.lt.s32.totalorder %s309, 3
        %s311 = scalar_select %p310, %s309, 3
        %s312 = smul.u32 8, %s311
        %p313 = scmp.lt.s32.totalorder %s29, 1
        %s314 = scalar_select %p313, %s29, 1
        %p315 = scmp.lt.s32.totalorder %s308, 4
        %s316 = scalar_select %p315, %s308, 4
        %s317 = smul.addr %s314, 5
        %s318 = sadd.s32 %s316, %s317
        %s319 = smul.addr %s318, 8
        %s320 = scalar_lea.vmem %s0, %s319
        %p321 = pneg %p60
        %p322 = pneg %p57
        %s323 = smul.u32 3, %s30
        %s324 = ssub.s32 5, %s323
        %p325 = scmp.lt.s32.totalorder %s324, 3
        %s326 = scalar_select %p325, %s324, 3
        %s327 = smul.u32 8, %s326
        %p328 = scmp.lt.s32.totalorder %s29, 1
        %s329 = scalar_select %p328, %s29, 1
        %p330 = scmp.lt.s32.totalorder %s323, 4
        %s331 = scalar_select %p330, %s323, 4
        %s332 = smul.addr %s329, 5
        %s333 = sadd.s32 %s331, %s332
        %s334 = smul.addr %s333, 8
        %s335 = scalar_lea.vmem %s1, %s334
        %p336 = pneg %p88
        %p337 = pneg %p85
        %p338 = pneg %p109
        %p339 = pneg %p106
        %p340 = pneg %p130
        %p341 = pneg %p127
        %p342 = pneg %p151
        %p343 = pneg %p148
        %p344 = pneg %p172
        %p345 = pneg %p169
        %p346 = pneg %p200
        %p347 = pneg %p197
        %s348 = sand.u32 %s187, 1
        %s349 = scalar_lea.sflag [#allocation3], %s348
        %s350 = sand.u32 %s187, 1
        %s351 = scalar_lea.vmem [#allocation2], %s350
        %p352 = pneg %p228
        %p353 = pneg %p225
        %s354 = sand.u32 %s215, 1
        %s355 = scalar_lea.sflag [#allocation5], %s354
        %s356 = sand.u32 %s215, 1
        %s357 = scalar_lea.vmem [#allocation4], %s356
        %s358 = smul.u32 3, %s30
        %s359 = ssub.s32 5, %s358
        %p360 = scmp.lt.s32.totalorder %s359, 3
        %s361 = scalar_select %p360, %s359, 3
        %s362 = smul.u32 8, %s361
        %p363 = scmp.lt.s32.totalorder %s29, 1
        %s364 = scalar_select %p363, %s29, 1
        %p365 = scmp.lt.s32.totalorder %s358, 4
        %s366 = scalar_select %p365, %s358, 4
        %s367 = smul.addr %s364, 5
        %s368 = sadd.s32 %s366, %s367
        %s369 = smul.addr %s368, 8
        %s370 = scalar_lea.vmem %s0, %s369
        %s371 = smul.u32 3, %s30
        %s372 = ssub.s32 5, %s371
        %p373 = scmp.lt.s32.totalorder %s372, 3
        %s374 = scalar_select %p373, %s372, 3
        %s375 = smul.u32 8, %s374
        %s376 = smul.u32 3, %s30
        %s377 = ssub.s32 5, %s376
        %p378 = scmp.lt.s32.totalorder %s377, 3
        %s379 = scalar_select %p378, %s377, 3
        %s380 = smul.u32 8, %s379
        %p381 = scmp.lt.s32.totalorder %s29, 1
        %s382 = scalar_select %p381, %s29, 1
        %p383 = scmp.lt.s32.totalorder %s376, 4
        %s384 = scalar_select %p383, %s376, 4
        %s385 = smul.addr %s382, 5
        %s386 = sadd.s32 %s384, %s385
        %s387 = smul.addr %s386, 8
        %s388 = scalar_lea.vmem %s1, %s387
        %s389 = smul.u32 3, %s30
        %s390 = ssub.s32 5, %s389
        %p391 = scmp.lt.s32.totalorder %s390, 3
        %s392 = scalar_select %p391, %s390, 3
        %s393 = smul.u32 8, %s392
        %v394 = vld [vmem:[%s370] sm:$0xff]
        %v395 = vld [vmem:[%s370 + $0x8] sm:$0xff]
        %v396 = vld [vmem:[%s370 + $0x10] sm:$0xff]
        %v397 = vld [vmem:[%s388] sm:$0xff]
        %v398 = vld [vmem:[%s388 + $0x8] sm:$0xff]
        %v399 = vld [vmem:[%s388 + $0x10] sm:$0xff]
        %v400 = vsub.f32 %v394, %v397
        %v401 = vsub.f32 %v395, %v398
        %v402 = vsub.f32 %v396, %v399
        %v403 = vmul.f32 %v400, %v400
        %v404 = vmul.f32 %v401, %v401
        %v405 = vmul.f32 %v402, %v402
        %s406 = smul.u32 %s30, 24
        %v407 = vlaneseq
        %v408 = vshrl.u32 %v407, 7
        %v409 = vadd.s32 %v408, 8
        %v410 = vadd.s32 %v408, 16
        %v411 = vstv %s406
        %v412 = vadd.s32 %v411, %v408
        %v413 = vadd.s32 %v411, %v409
        %v414 = vadd.s32 %v411, %v410
        %vm415 = vcmp.lt.s32.totalorder %v412, 37
        %vm416 = vcmp.lt.s32.totalorder %v413, 37
        %vm417 = vcmp.lt.s32.totalorder %v414, 37
        %v418 = vsel %vm415, %v403, 0.0
        %v419 = vsel %vm416, %v404, 0.0
        %v420 = vsel %vm417, %v405, 0.0
        %vm421 = vcmask 654336
        %v422 = vsel %vm421, %v418, 0.0
        %v423 = vsel %vm421, %v419, 0.0
        %v424 = vadd.f32 %v422, %v423
        %v425 = vsel %vm421, %v420, 0.0
        %v426 = vadd.f32 %v424, %v425
        %v427 = vrot.slane %v426, 4
        %v428 = vadd.f32 %v426, %v427
        %v429 = vrot.slane %v428, 2
        %v430 = vadd.f32 %v428, %v429
        %v431 = vrot.slane %v430, 1
        %v432 = vadd.f32 %v430, %v431
        %vm433 = vcmask 647168
        %434 = vst.msk [vmem:[%s351] sm:$0x1] %vm433, %v432
        %435 = vst [vmem:[%s357] sm:$0x1] 0.0
        %p436 = scmp.eq.s32.totalorder %s29, 0
        %p437 = scmp.eq.s32.totalorder %s30, 0
        %p438 = pnand %p436, %p437
        %p439 = pneg %p438
        // Predicated region
        $region45: #{tpu_custom_call.1} parent=43 // pred_check
          _
        $region46: #{tpu_custom_call.1} parent=43 // pred_check_branch
          %441 = sbr.rel (%p438) target = $region48
        $region47: #{tpu_custom_call.1} parent=43 // pred_region
          %v442 = vld [vmem:[%s2] sm:$0x3]
          %v443 = vld [vmem:[%s3] sm:$0x3]
          %v444 = vcvt.s32.f32 %v443
          %v445 = vadd.f32 %v444, 1.0
          %v446 = vlog2.pop %v445
          %v447 = vmul.f32 %v446, 0.6931472
          %v448 = vmul.f32 -0.5, %v444
          %v449 = vadd.f32 %v448, 1.0
          %v450 = vmul.f32 %v449, %v444
          %v451 = vand.u32 2147483647, %v444
          %vm452 = vcmp.lt.f32.partialorder %v451, 0.0004427343
          %v453 = vsel %vm452, %v450, %v447
          %v454 = vld [vmem:[%s4] sm:$0x3]
          %v455 = vld [vmem:[%s5] sm:$0x3]
          %v456 = vadd.f32 %v455, 1.0
          %v457 = vlog2.pop %v456
          %v458 = vmul.f32 %v457, 0.6931472
          %v459 = vmul.f32 -0.5, %v455
          %v460 = vadd.f32 %v459, 1.0
          %v461 = vmul.f32 %v460, %v455
          %v462 = vand.u32 2147483647, %v455
          %vm463 = vcmp.lt.f32.partialorder %v462, 0.0004427343
          %v464 = vsel %vm463, %v461, %v458
          %v465 = vsub.f32 %v442, %v453
          %v466 = vand.u32 2147483647, %v465
          %vm467 = vcmask 99328
          %v468 = vsel %vm467, %v466, 0.0
          %469 = vadd.xlane.f32.xlu0 %v468
          %v470 = vpop.xlane.xlu0 %469
          %v471 = vrot.slane %v470, 4
          %v472 = vadd.f32 %v470, %v471
          %v473 = vrot.slane %v472, 2
          %v474 = vadd.f32 %v472, %v473
          %v475 = vrot.slane %v474, 1
          %v476 = vadd.f32 %v474, %v475
          %s477 = vtos %v476
          %v478 = vsub.f32 %v454, %v464
          %v479 = vmul.f32 %v478, %v478
          %v480 = vsel %vm467, %v479, 0.0
          %481 = vadd.xlane.f32.xlu0 %v480
          %v482 = vpop.xlane.xlu0 %481
          %v483 = vrot.slane %v482, 4
          %v484 = vadd.f32 %v482, %v483
          %v485 = vrot.slane %v484, 2
          %v486 = vadd.f32 %v484, %v485
          %v487 = vrot.slane %v486, 1
          %v488 = vadd.f32 %v486, %v487
          %s489 = vtos %v488
          %v490 = vlaneseq
          %v491 = vand.u32 %v490, 127
          %vm492 = vcmp.eq.s32.totalorder %v491, 0
          %v493 = vstv %s477
          %v494 = vsel %vm492, %v493, 0.0
          %vm495 = vcmp.eq.s32.totalorder %v491, 1
          %v496 = vstv %s489
          %v497 = vsel %vm495, %v496, 0.0
          %v498 = vadd.f32 %v494, %v497
          %499 = vst [vmem:[%s357] sm:$0x1] %v498
        $region48: #{tpu_custom_call.1} parent=43 // pred_fallthru
          _
        %s500 = sand.u32 %s187, 1
        %s501 = scalar_lea.sflag [#allocation3], %s500
        %s502 = sand.u32 %s187, 1
        %s503 = scalar_lea.vmem [#allocation2], %s502
        %s504 = sand.u32 %s215, 1
        %s505 = scalar_lea.sflag [#allocation5], %s504
        %s506 = sand.u32 %s215, 1
        %s507 = scalar_lea.vmem [#allocation4], %s506
        // Predicated region
        $region49: #{tpu_custom_call.1} parent=43 // pred_check
          %p508 = pneg %p197
        $region50: #{tpu_custom_call.1} parent=43 // pred_check_branch
          %510 = sbr.rel (%p508) target = $region52
        $region51: #{tpu_custom_call.1} parent=43 // pred_region
          %512 = vsyncadd %s501, 0
          %s513 = smul.addr %s29, 2
          %s514 = sadd.s32 %s30, %s513
          %s515 = scalar_lea.hbm %s6, %s514
          %s517 = sshll.u32 %s503, 4
          %s518 = int_to_ptr.vmem [resolvable:$true] %s517
          %s519 = sshll.u32 %s515, 4
          %s520 = int_to_ptr.hbm [resolvable:$true] %s519
          %522 = dma.vmem_to_hbm [thread:$0]  %s518, 16, %s520, %s501
        $region52: #{tpu_custom_call.1} parent=43 // pred_fallthru
          _
        // Predicated region
        $region53: #{tpu_custom_call.1} parent=43 // pred_check
          %p523 = pneg %p225
        $region54: #{tpu_custom_call.1} parent=43 // pred_check_branch
          %525 = sbr.rel (%p523) target = $region56
        $region55: #{tpu_custom_call.1} parent=43 // pred_region
          %527 = vsyncadd %s505, 0
          %s528 = smul.addr %s29, 2
          %s529 = sadd.s32 %s30, %s528
          %s530 = scalar_lea.hbm %s7, %s529
          %s532 = sshll.u32 %s507, 4
          %s533 = int_to_ptr.vmem [resolvable:$true] %s532
          %s534 = sshll.u32 %s530, 4
          %s535 = int_to_ptr.hbm [resolvable:$true] %s534
          %537 = dma.vmem_to_hbm [thread:$0]  %s533, 16, %s535, %s505
        $region56: #{tpu_custom_call.1} parent=43 // pred_fallthru
          _
      $region44: #{tpu_custom_call.1} parent=5 // pred_fallthru
        _
      %p538 = scmp.le.s32.totalorder 2, %s20
      // Predicated region
      $region57: #{tpu_custom_call.1} parent=5 // pred_check
        %p539 = pneg %p538
      $region58: #{tpu_custom_call.1} parent=5 // pred_check_branch
        %541 = sbr.rel (%p539) target = $region60
      $region59: #{tpu_custom_call.1} parent=5 // pred_region
        %s542 = ssub.s32 %s20, 2
        // Predicated region
        $region61: #{tpu_custom_call.1} parent=59 // pred_check
          %p543 = pneg %p203
        $region62: #{tpu_custom_call.1} parent=59 // pred_check_branch
          %545 = sbr.rel (%p543) target = $region64
        $region63: #{tpu_custom_call.1} parent=59 // pred_region
          %s546 = sand.u32 %s188, 1
          %s547 = scalar_lea.sflag [#allocation3], %s546
          %s548 = sand.u32 %s188, 1
          %s549 = scalar_lea.vmem [#allocation2], %s548
          %551 = dma.done %s547, 16
        $region64: #{tpu_custom_call.1} parent=59 // pred_fallthru
          _
        // Predicated region
        $region65: #{tpu_custom_call.1} parent=59 // pred_check
          %p552 = pneg %p231
        $region66: #{tpu_custom_call.1} parent=59 // pred_check_branch
          %554 = sbr.rel (%p552) target = $region68
        $region67: #{tpu_custom_call.1} parent=59 // pred_region
          %s555 = sand.u32 %s216, 1
          %s556 = scalar_lea.sflag [#allocation5], %s555
          %s557 = sand.u32 %s216, 1
          %s558 = scalar_lea.vmem [#allocation4], %s557
          %560 = dma.done %s556, 16
        $region68: #{tpu_custom_call.1} parent=59 // pred_fallthru
          _
      $region60: #{tpu_custom_call.1} parent=5 // pred_fallthru
        _
    $region6: #{tpu_custom_call.1} parent=1 // loop_footer
      %s24 = sadd.s32 1, %s20
    $region7: #{tpu_custom_call.1} parent=1 // loop_footer_branch
      %19 = sbr.rel target = $region3
    $region8: #{tpu_custom_call.1} parent=1 // loop_exit
      _
    %561 = vsyncpa [#allocation3], 1
    %s562 = scalar_lea.sflag [#allocation3], 1
    %563 = vsyncpa %s562, 1
    %564 = vsyncpa [#allocation5], 1
    %s565 = scalar_lea.sflag [#allocation5], 1
    %566 = vsyncpa %s565, 1

</llo_original>
